<compile_context>
chip_gen: v5e
topology: v5e:2x2
jax: 0.10.0
libtpu: 0.0.40
codegen_flags: <defaults>
</compile_context>

<pallas_src>
import functools

import jax
import jax.numpy as jnp
from jax import lax
from jax.experimental import pallas as pl
from jax.experimental.pallas import tpu as pltpu

_LANES = 128
_SUBLANES = 8
_ALIGN = _SUBLANES * _LANES            # 1024-element (one f32 vreg) alignment
_MAX_BLOCK_ROWS = 8192                 # 4 MiB f32 / 2 MiB bf16 per input block
_VMEM_LIMIT_BYTES = 32 * 1024 * 1024   # 2 inputs x 2 buffers x 4 MiB + headroom


def _num_tensorcores():
    """2 only on multi-TensorCore chips (v4/v5p megacore, v7x); else 1."""
    try:
        kind = jax.devices()[0].device_kind.lower()
    except Exception:
        return 1
    return 2 if any(s in kind for s in ("v4", "v5p", "7")) else 1


def _rmse_kernel(pred_ref, true_ref, out_ref, *,
                 block_rows, blocks_per_core, total_rows):
    c = pl.program_id(0)          # core / parallel axis
    i = pl.program_id(1)          # reduction axis over row-blocks

    @pl.when(i == 0)
    def _init():
        out_ref[...] = jnp.zeros_like(out_ref)

    d = pred_ref[...].astype(jnp.float32) - true_ref[...].astype(jnp.float32)
    sq = d * d

    # LOGICAL (unclamped) block index: for clamped-duplicate blocks this lies
    # past total_rows, so the tail mask below zeroes them entirely.
    blk = c * blocks_per_core + i
    is_tail = (blk + 1) * block_rows > total_rows
    groups = block_rows // _SUBLANES

    @pl.when(jnp.logical_not(is_tail))
    def _interior():
        # Vreg-aligned fold: (G,8,128) sum over axis 0 -> one (8,128) add.
        out_ref[...] += jnp.sum(
            sq.reshape(groups, _SUBLANES, _LANES), axis=0)

    @pl.when(is_tail)
    def _tail():
        row_ids = blk * block_rows + lax.broadcasted_iota(
            jnp.int32, sq.shape, 0)
        masked = jnp.where(row_ids < total_rows, sq, jnp.float32(0.0))
        out_ref[...] += jnp.sum(
            masked.reshape(groups, _SUBLANES, _LANES), axis=0)


def rmse_loss(y_pred, y_true, *, block_rows=None):
    """Root-mean-squared-error between two equally shaped arrays (scalar f32)."""
    y_pred = jnp.asarray(y_pred)
    y_true = jnp.asarray(y_true)
    assert y_pred.shape == y_true.shape, "Shape mismatch."
    n = int(y_pred.size)

    p = jnp.reshape(y_pred, (-1,))    # free reshape, native dtype preserved
    t = jnp.reshape(y_true, (-1,))

    n_main = (n // _ALIGN) * _ALIGN   # vreg-aligned prefix handled by kernel
    rows = n_main // _LANES           # always a multiple of 8

    # <=1023-element ragged tail (and the n == 0 case): tiny wrapper-side
    # reduce instead of a full-array jnp.pad copy.
    if n_main < n:
        td = p[n_main:].astype(jnp.float32) - t[n_main:].astype(jnp.float32)
        tail_sum = jnp.sum(td * td)
    else:
        tail_sum = jnp.float32(0.0)

    if rows == 0:
        total = tail_sum
    else:
        if n_main == n:
            p2 = p.reshape(rows, _LANES)       # pure bitcast, no copy
            t2 = t.reshape(rows, _LANES)
        else:
            p2 = p[:n_main].reshape(rows, _LANES)
            t2 = t[:n_main].reshape(rows, _LANES)

        if block_rows is None:
            block_rows = min(rows, _MAX_BLOCK_ROWS)
        else:
            block_rows = min(rows,
                             max(_SUBLANES,
                                 (int(block_rows) // _SUBLANES) * _SUBLANES))
        num_blocks = -(-rows // block_rows)

        ncores = min(_num_tensorcores(), num_blocks)
        blocks_per_core = -(-num_blocks // ncores)

        kernel = functools.partial(
            _rmse_kernel,
            block_rows=block_rows,
            blocks_per_core=blocks_per_core,
            total_rows=rows,
        )

        if ncores * blocks_per_core == num_blocks:
            def in_map(c, i):
                return (c * blocks_per_core + i, 0)
        else:
            # Clamp so the DMA never walks past the array; the duplicate block
            # is fully zeroed in-kernel via the UNCLAMPED logical row ids.
            def in_map(c, i):
                return (jnp.minimum(c * blocks_per_core + i, num_blocks - 1), 0)

        partials = pl.pallas_call(
            kernel,
            out_shape=jax.ShapeDtypeStruct(
                (ncores * _SUBLANES, _LANES), jnp.float32),
            grid_spec=pltpu.PrefetchScalarGridSpec(
                num_scalar_prefetch=0,
                grid=(ncores, blocks_per_core),
                in_specs=[
                    pl.BlockSpec((block_rows, _LANES), in_map),
                    pl.BlockSpec((block_rows, _LANES), in_map),
                ],
                out_specs=pl.BlockSpec((_SUBLANES, _LANES),
                                       lambda c, i: (c, 0)),
            ),
            compiler_params=pltpu.CompilerParams(
                dimension_semantics=("parallel", "arbitrary"),
                vmem_limit_bytes=_VMEM_LIMIT_BYTES,
            ),
        )(p2, t2)

        total = jnp.sum(partials) + tail_sum

    # n == 0 naturally gives 0/0 -> nan, matching torch.nn.MSELoss on empty.
    return jnp.sqrt(total / jnp.float32(n))


if __name__ == "__main__":
    key = jax.random.PRNGKey(0)
    k1, k2 = jax.random.split(key)

    # (n_nodes, n_samples) as described in the module docstring.
    n_nodes, n_samples = 16, 256
    y_pred = jax.random.normal(k1, (n_nodes, n_samples), dtype=jnp.float32)
    y_true = jax.random.normal(k2, (n_nodes, n_samples), dtype=jnp.float32)

    loss = jax.block_until_ready(rmse_loss(y_pred, y_true))
    ref = jnp.sqrt(jnp.mean((y_pred - y_true) ** 2))
    assert jnp.allclose(loss, ref, rtol=1e-5, atol=1e-6), (loss, ref)

    # 1-D ragged case (n_nodes,): smaller than one 1024-elem tile -> pure
    # wrapper tail path (no pad, no kernel).
    yp1 = jax.random.normal(k1, (301,), dtype=jnp.float32)
    yt1 = jax.random.normal(k2, (301,), dtype=jnp.float32)
    loss1 = jax.block_until_ready(rmse_loss(yp1, yt1))
    ref1 = jnp.sqrt(jnp.mean((yp1 - yt1) ** 2))
    assert jnp.allclose(loss1, ref1, rtol=1e-5, atol=1e-6), (loss1, ref1)

    # Unaligned total size: kernel slab + wrapper tail combined.
    yp2 = jax.random.normal(k1, (3, 700), dtype=jnp.float32)
    yt2 = jax.random.normal(k2, (3, 700), dtype=jnp.float32)
    loss2 = jax.block_until_ready(rmse_loss(yp2, yt2))
    ref2 = jnp.sqrt(jnp.mean((yp2 - yt2) ** 2))
    assert jnp.allclose(loss2, ref2, rtol=1e-5, atol=1e-6), (loss2, ref2)

    # Multi-block grid with a ragged last block (exercises in-kernel masking).
    yp3 = jax.random.normal(k1, (40, 128), dtype=jnp.float32)
    yt3 = jax.random.normal(k2, (40, 128), dtype=jnp.float32)
    loss3 = jax.block_until_ready(rmse_loss(yp3, yt3, block_rows=16))
    ref3 = jnp.sqrt(jnp.mean((yp3 - yt3) ** 2))
    assert jnp.allclose(loss3, ref3, rtol=1e-5, atol=1e-6), (loss3, ref3)

    # Native bf16 inputs -- exercises in-kernel f32 upcast path.
    ypb = y_pred.astype(jnp.bfloat16)
    ytb = y_true.astype(jnp.bfloat16)
    lossb = jax.block_until_ready(rmse_loss(ypb, ytb))
    refb = jnp.sqrt(jnp.mean(
        (ypb.astype(jnp.float32) - ytb.astype(jnp.float32)) ** 2))
    assert jnp.allclose(lossb, refb, rtol=1e-5, atol=1e-6), (lossb, refb)

    print("KERNEL_OK")
</pallas_src>

<mosaic_0001>
module attributes {stable_mosaic.version = 11 : i64} {
  func.func @_rmse_kernel(%arg0: i32, %arg1: i32, %arg2: memref<32x128xf32, #tpu.memory_space<vmem>>, %arg3: memref<32x128xf32, #tpu.memory_space<vmem>>, %arg4: memref<8x128xf32, #tpu.memory_space<vmem>>) attributes {dimension_semantics = [#tpu.dimension_semantics<parallel>, #tpu.dimension_semantics<arbitrary>], iteration_bounds = array<i64: 1, 1>, scalar_prefetch = 0 : i64, scratch_operands = 0 : i64, tpu.core_type = #tpu.core_type<tc>, window_params = [{transform_indices = @transform_0, window_bounds = array<i64: 32, 128>}, {transform_indices = @transform_1, window_bounds = array<i64: 32, 128>}, {transform_indices = @transform_2, window_bounds = array<i64: 8, 128>}]} {
    %c0_i32 = arith.constant 0 : i32
    %0 = arith.cmpi eq, %arg1, %c0_i32 : i32
    %1 = arith.extui %0 : i1 to i32
    %c0_i32_0 = arith.constant 0 : i32
    %2 = arith.cmpi ne, %1, %c0_i32_0 : i32
    scf.if %2 {
      %cst = arith.constant 0.000000e+00 : f32
      %17 = vector.broadcast %cst : f32 to vector<8x128xf32>
      %c0_8 = arith.constant 0 : index
      %c0_9 = arith.constant 0 : index
      %18 = vector.load %arg4[%c0_8, %c0_9] : memref<8x128xf32, #tpu.memory_space<vmem>>, vector<8x128xf32>
      tpu.vector_store %arg4[%c0_8, %c0_9], %17 {strides = array<i32>} : memref<8x128xf32, #tpu.memory_space<vmem>>, vector<8x128xf32>,
    } else {
    }
    %c0 = arith.constant 0 : index
    %c0_1 = arith.constant 0 : index
    %3 = vector.load %arg2[%c0, %c0_1] : memref<32x128xf32, #tpu.memory_space<vmem>>, vector<32x128xf32>
    %c0_2 = arith.constant 0 : index
    %c0_3 = arith.constant 0 : index
    %4 = vector.load %arg3[%c0_2, %c0_3] : memref<32x128xf32, #tpu.memory_space<vmem>>, vector<32x128xf32>
    %5 = arith.subf %3, %4 : vector<32x128xf32>
    %6 = arith.mulf %5, %5 : vector<32x128xf32>
    %c1_i32 = arith.constant 1 : i32
    %7 = arith.muli %arg0, %c1_i32 : i32
    %8 = arith.addi %7, %arg1 : i32
    %c1_i32_4 = arith.constant 1 : i32
    %9 = arith.addi %8, %c1_i32_4 : i32
    %c32_i32 = arith.constant 32 : i32
    %10 = arith.muli %9, %c32_i32 : i32
    %c32_i32_5 = arith.constant 32 : i32
    %11 = arith.cmpi sgt, %10, %c32_i32_5 : i32
    %true = arith.constant true
    %12 = arith.xori %11, %true : i1
    %13 = arith.extui %12 : i1 to i32
    %c0_i32_6 = arith.constant 0 : i32
    %14 = arith.cmpi ne, %13, %c0_i32_6 : i32
    scf.if %14 {
      %c0_8 = arith.constant 0 : index
      %c0_9 = arith.constant 0 : index
      %17 = vector.load %arg4[%c0_8, %c0_9] : memref<8x128xf32, #tpu.memory_space<vmem>>, vector<8x128xf32>
      %18 = vector.shape_cast %6 : vector<32x128xf32> to vector<4x8x128xf32>
      %cst = arith.constant dense<0.000000e+00> : vector<8x128xf32>
      %19 = vector.multi_reduction <add>, %18, %cst [0] : vector<4x8x128xf32> to vector<8x128xf32>
      %20 = arith.addf %17, %19 : vector<8x128xf32>
      %c0_10 = arith.constant 0 : index
      %c0_11 = arith.constant 0 : index
      %21 = vector.load %arg4[%c0_10, %c0_11] : memref<8x128xf32, #tpu.memory_space<vmem>>, vector<8x128xf32>
      tpu.vector_store %arg4[%c0_10, %c0_11], %20 {strides = array<i32>} : memref<8x128xf32, #tpu.memory_space<vmem>>, vector<8x128xf32>,
    } else {
    }
    %15 = arith.extui %11 : i1 to i32
    %c0_i32_7 = arith.constant 0 : i32
    %16 = arith.cmpi ne, %15, %c0_i32_7 : i32
    scf.if %16 {
      %c32_i32_8 = arith.constant 32 : i32
      %17 = arith.muli %8, %c32_i32_8 : i32
      %18 = tpu.iota {dimensions = array<i32: 0>} : vector<32x128xi32>
      %19 = vector.broadcast %17 : i32 to vector<32x128xi32>
      %20 = arith.addi %19, %18 : vector<32x128xi32>
      %c32_i32_9 = arith.constant 32 : i32
      %21 = vector.broadcast %c32_i32_9 : i32 to vector<32x128xi32>
      %22 = arith.cmpi slt, %20, %21 : vector<32x128xi32>
      %cst = arith.constant 0.000000e+00 : f32
      %23 = vector.broadcast %cst : f32 to vector<32x128xf32>
      %24 = arith.select %22, %6, %23 : vector<32x128xi1>, vector<32x128xf32>
      %c0_10 = arith.constant 0 : index
      %c0_11 = arith.constant 0 : index
      %25 = vector.load %arg4[%c0_10, %c0_11] : memref<8x128xf32, #tpu.memory_space<vmem>>, vector<8x128xf32>
      %26 = vector.shape_cast %24 : vector<32x128xf32> to vector<4x8x128xf32>
      %cst_12 = arith.constant dense<0.000000e+00> : vector<8x128xf32>
      %27 = vector.multi_reduction <add>, %26, %cst_12 [0] : vector<4x8x128xf32> to vector<8x128xf32>
      %28 = arith.addf %25, %27 : vector<8x128xf32>
      %c0_13 = arith.constant 0 : index
      %c0_14 = arith.constant 0 : index
      %29 = vector.load %arg4[%c0_13, %c0_14] : memref<8x128xf32, #tpu.memory_space<vmem>>, vector<8x128xf32>
      tpu.vector_store %arg4[%c0_13, %c0_14], %28 {strides = array<i32>} : memref<8x128xf32, #tpu.memory_space<vmem>>, vector<8x128xf32>,
    } else {
    }
    return
  }
  func.func @transform_0(%arg0: i32, %arg1: i32) -> (i32, i32) {
    %c1_i32 = arith.constant 1 : i32
    %0 = arith.muli %arg0, %c1_i32 : i32
    %1 = arith.addi %0, %arg1 : i32
    %c0_i32 = arith.constant 0 : i32
    %c0_i32_0 = arith.constant 0 : i32
    return %1, %c0_i32 : i32, i32
  }
  func.func @transform_1(%arg0: i32, %arg1: i32) -> (i32, i32) {
    %c1_i32 = arith.constant 1 : i32
    %0 = arith.muli %arg0, %c1_i32 : i32
    %1 = arith.addi %0, %arg1 : i32
    %c0_i32 = arith.constant 0 : i32
    %c0_i32_0 = arith.constant 0 : i32
    return %1, %c0_i32 : i32, i32
  }
  func.func @transform_2(%arg0: i32, %arg1: i32) -> (i32, i32) {
    %c0_i32 = arith.constant 0 : i32
    %c0_i32_0 = arith.constant 0 : i32
    return %arg0, %c0_i32 : i32, i32
  }
}

</mosaic_0001>

<llo_original>
// kernel: tpu_custom_call.1
$region0: #{tpu_custom_call.1}
  #allocation0 [shape = 'u32[]', space=smem, size = 0x4, offset = 0x4, fixed_abs, tag = 'smem constant byte address 0x4 - core index']
  #allocation1 [shape = 'u32[72,128]{1,0:T(1,128)}', space=vmem, size = 0x9000, scoped, tag = 'internal scratch']
  %s0 = inlined_call_operand.hbm [shape: f32[32,128], index: 0, kind: input, shape index: {}]
  %s1 = inlined_call_operand.hbm [shape: f32[32,128], index: 1, kind: input, shape index: {}]
  %s2 = inlined_call_operand.hbm [shape: f32[8,128], index: 2, kind: output, shape index: {}]
  %s3 = sld [smem:[#allocation0]]
  $region38: #{tpu_custom_call.1} parent=0
    _
  %s5 = ssub.s32 1, %s3
  %s6 = scalar_select 0, %s5, %s3
  $region1: #{tpu_custom_call.1} parent=0
    #allocation2 [shape = 'u8[16384]{0}', space=vmem, size = 0x4000, scoped, tag = 'input window, operand 0, single buffered']
    #allocation3 [shape = 's32[1]{0}', space=sflag, size = 0x4, scoped, tag = 'scoped memory for tpu_custom_call.1']
    #allocation4 [shape = 's32[1]{0}', space=sflag, size = 0x4, scoped, tag = 'scoped memory for tpu_custom_call.1']
    #allocation5 [shape = 'u8[16384]{0}', space=vmem, size = 0x4000, scoped, tag = 'input window, operand 1, single buffered']
    #allocation6 [shape = 's32[1]{0}', space=sflag, size = 0x4, scoped, tag = 'scoped memory for tpu_custom_call.1']
    #allocation7 [shape = 'u8[4096]{0}', space=vmem, size = 0x1000, scoped, tag = 'output window, operand 0, single buffered']
    %7 = vsyncpa [#allocation3], 0
    %8 = vsyncpa [#allocation6], 0
    %9 = vsyncpa [#allocation4], 0
    // Predicated region
    $region2: #{tpu_custom_call.1} parent=1 // pred_check
      _
    $region3: #{tpu_custom_call.1} parent=1 // pred_check_branch
      %11 = sbr.rel (0) target = $region5
    $region4: #{tpu_custom_call.1} parent=1 // pred_region
      %s12 = sadd.s32 0, 0
      %s13 = smul.u32 4, %s12
      %15 = vsyncadd [#allocation3], 0
      %s16 = smul.addr %s13, 8
      %s17 = scalar_lea.hbm %s0, %s16
      %s18 = sshll.u32 %s17, 4
      %s19 = int_to_ptr.hbm [resolvable:$true] %s18
      %s20 = sshll.u32 [#allocation2], 4
      %s21 = int_to_ptr.vmem [resolvable:$true] %s20
      %26 = dma.hbm_to_vmem [thread:$0]  %s19, 512, %s21, [#allocation3], 128, 128, 8
    $region5: #{tpu_custom_call.1} parent=1 // pred_fallthru
      _
    // Predicated region
    $region6: #{tpu_custom_call.1} parent=1 // pred_check
      _
    $region7: #{tpu_custom_call.1} parent=1 // pred_check_branch
      %28 = sbr.rel (0) target = $region9
    $region8: #{tpu_custom_call.1} parent=1 // pred_region
      %s29 = sadd.s32 0, 0
      %s30 = smul.u32 4, %s29
      %32 = vsyncadd [#allocation6], 0
      %s33 = smul.addr %s30, 8
      %s34 = scalar_lea.hbm %s1, %s33
      %s35 = sshll.u32 %s34, 4
      %s36 = int_to_ptr.hbm [resolvable:$true] %s35
      %s37 = sshll.u32 [#allocation5], 4
      %s38 = int_to_ptr.vmem [resolvable:$true] %s37
      %43 = dma.hbm_to_vmem [thread:$0]  %s36, 512, %s38, [#allocation6], 128, 128, 8
    $region9: #{tpu_custom_call.1} parent=1 // pred_fallthru
      _
    // Predicated region
    $region10: #{tpu_custom_call.1} parent=1 // pred_check
      _
    $region11: #{tpu_custom_call.1} parent=1 // pred_check_branch
      %45 = sbr.rel (0) target = $region13
    $region12: #{tpu_custom_call.1} parent=1 // pred_region
      %47 = dma.done [#allocation3], 512
    $region13: #{tpu_custom_call.1} parent=1 // pred_fallthru
      _
    // Predicated region
    $region14: #{tpu_custom_call.1} parent=1 // pred_check
      _
    $region15: #{tpu_custom_call.1} parent=1 // pred_check_branch
      %49 = sbr.rel (0) target = $region17
    $region16: #{tpu_custom_call.1} parent=1 // pred_region
      %51 = dma.done [#allocation6], 512
    $region17: #{tpu_custom_call.1} parent=1 // pred_fallthru
      _
    %s52 = sadd.s32 0, 0
    %s53 = smul.u32 4, %s52
    %s54 = sadd.s32 0, 0
    %s55 = smul.u32 4, %s54
    %p56 = scmp.eq.s32.totalorder 0, 0
    // Predicated region
    $region18: #{tpu_custom_call.1} parent=1 // pred_check
      %p57 = pneg %p56
    $region19: #{tpu_custom_call.1} parent=1 // pred_check_branch
      %59 = sbr.rel (%p57) target = $region21
    $region20: #{tpu_custom_call.1} parent=1 // pred_region
      %60 = vst [vmem:[#allocation7] sm:$0xff] 0.0
    $region21: #{tpu_custom_call.1} parent=1 // pred_fallthru
      _
    %v61 = vld [vmem:[#allocation2] sm:$0xff]
    %v62 = vld [vmem:[#allocation2 + $0x8] sm:$0xff]
    %v63 = vld [vmem:[#allocation2 + $0x10] sm:$0xff]
    %v64 = vld [vmem:[#allocation2 + $0x18] sm:$0xff]
    %v65 = vld [vmem:[#allocation5] sm:$0xff]
    %v66 = vld [vmem:[#allocation5 + $0x8] sm:$0xff]
    %v67 = vld [vmem:[#allocation5 + $0x10] sm:$0xff]
    %v68 = vld [vmem:[#allocation5 + $0x18] sm:$0xff]
    %v69 = vsub.f32 %v61, %v65
    %v70 = vsub.f32 %v62, %v66
    %v71 = vsub.f32 %v63, %v67
    %v72 = vsub.f32 %v64, %v68
    %v73 = vmul.f32 %v69, %v69
    %v74 = vmul.f32 %v70, %v70
    %v75 = vmul.f32 %v71, %v71
    %v76 = vmul.f32 %v72, %v72
    %s77 = sadd.s32 0, 0
    %s78 = sadd.s32 %s77, 1
    %s79 = smul.u32 %s78, 32
    %p80 = scmp.gt.s32.totalorder %s79, 32
    %p81 = scmp.le.s32.totalorder %s79, 32
    // Predicated region
    $region22: #{tpu_custom_call.1} parent=1 // pred_check
      %p82 = pneg %p81
    $region23: #{tpu_custom_call.1} parent=1 // pred_check_branch
      %84 = sbr.rel (%p82) target = $region25
    $region24: #{tpu_custom_call.1} parent=1 // pred_region
      %v85 = vld [vmem:[#allocation7] sm:$0xff]
      %v86 = vadd.f32 %v73, %v74
      %v87 = vadd.f32 %v86, %v75
      %v88 = vadd.f32 %v87, %v76
      %v89 = vadd.f32 %v85, %v88
      %90 = vst [vmem:[#allocation7] sm:$0xff] %v89
    $region25: #{tpu_custom_call.1} parent=1 // pred_fallthru
      _
    // Predicated region
    $region26: #{tpu_custom_call.1} parent=1 // pred_check
      %p91 = pneg %p80
    $region27: #{tpu_custom_call.1} parent=1 // pred_check_branch
      %93 = sbr.rel (%p91) target = $region29
    $region28: #{tpu_custom_call.1} parent=1 // pred_region
      %s94 = smul.u32 %s77, 32
      %v95 = vlaneseq
      %v96 = vshrl.u32 %v95, 7
      %v97 = vadd.s32 %v96, 8
      %v98 = vadd.s32 %v96, 16
      %v99 = vadd.s32 %v96, 24
      %v100 = vstv %s94
      %v101 = vadd.s32 %v100, %v96
      %v102 = vadd.s32 %v100, %v97
      %v103 = vadd.s32 %v100, %v98
      %v104 = vadd.s32 %v100, %v99
      %vm105 = vcmp.lt.s32.totalorder %v101, 32
      %vm106 = vcmp.lt.s32.totalorder %v102, 32
      %vm107 = vcmp.lt.s32.totalorder %v103, 32
      %vm108 = vcmp.lt.s32.totalorder %v104, 32
      %v109 = vsel %vm105, %v73, 0.0
      %v110 = vsel %vm106, %v74, 0.0
      %v111 = vsel %vm107, %v75, 0.0
      %v112 = vsel %vm108, %v76, 0.0
      %v113 = vld [vmem:[#allocation7] sm:$0xff]
      %v114 = vadd.f32 %v109, %v110
      %v115 = vadd.f32 %v114, %v111
      %v116 = vadd.f32 %v115, %v112
      %v117 = vadd.f32 %v113, %v116
      %118 = vst [vmem:[#allocation7] sm:$0xff] %v117
    $region29: #{tpu_custom_call.1} parent=1 // pred_fallthru
      _
    // Predicated region
    $region30: #{tpu_custom_call.1} parent=1 // pred_check
      _
    $region31: #{tpu_custom_call.1} parent=1 // pred_check_branch
      %120 = sbr.rel (0) target = $region33
    $region32: #{tpu_custom_call.1} parent=1 // pred_region
      %122 = vsyncadd [#allocation4], 0
      %s124 = sshll.u32 [#allocation7], 4
      %s125 = int_to_ptr.vmem [resolvable:$true] %s124
      %s126 = sshll.u32 %s2, 4
      %s127 = int_to_ptr.hbm [resolvable:$true] %s126
      %129 = dma.vmem_to_hbm [thread:$0]  %s125, 128, %s127, [#allocation4]
    $region33: #{tpu_custom_call.1} parent=1 // pred_fallthru
      _
    // Predicated region
    $region34: #{tpu_custom_call.1} parent=1 // pred_check
      _
    $region35: #{tpu_custom_call.1} parent=1 // pred_check_branch
      %131 = sbr.rel (0) target = $region37
    $region36: #{tpu_custom_call.1} parent=1 // pred_region
      %133 = dma.done [#allocation4], 128
    $region37: #{tpu_custom_call.1} parent=1 // pred_fallthru
      _
    %134 = vsyncpa [#allocation3], 1
    %135 = vsyncpa [#allocation6], 1
    %136 = vsyncpa [#allocation4], 1

</llo_original>
